<compile_context>
chip_gen: v7x
topology: tpu7x:2x2x1
jax: 0.10.0
libtpu: 0.0.40
codegen_flags: <defaults>
</compile_context>

<pallas_src>
import jax
import jax.numpy as jnp
from jax.experimental import pallas as pl
from jax.experimental.pallas import tpu as pltpu


_LN_EPS = 1e-5  # PyTorch nn.LayerNorm default


def _round_up(x, m):
    return ((x + m - 1) // m) * m


def _vmem_capacity_bytes(default=64 * 1024 * 1024):
    try:
        cap = getattr(pltpu.get_tpu_info(), "vmem_capacity_bytes", None)
        if cap:
            return int(cap)
    except Exception:
        pass
    return default


def _layernorm_f32(x, gamma, beta):
    """LayerNorm with f32 statistics; single-pass var = E[x^2] - mean^2."""
    x32 = x.astype(jnp.float32)
    mu = jnp.mean(x32, axis=-1, keepdims=True)
    var = jnp.mean(x32 * x32, axis=-1, keepdims=True) - mu * mu
    var = jnp.maximum(var, 0.0)  # guard tiny negative round-off
    xn = (x32 - mu) * jax.lax.rsqrt(var + _LN_EPS)
    return xn * gamma.astype(jnp.float32) + beta.astype(jnp.float32)


# ----------------------------------------------------------------------------
# Kernel 1 (once per batch): g_proj = Linear(LayerNorm(encoder_output))
#   -> (Npad, Hd), kept in the MXU dtype (bf16) for the fused kernel.
# ----------------------------------------------------------------------------
def _graph_node_kernel(enc_ref, gg_ref, gb_ref, gw_ref, gbias_ref, out_ref):
    y = _layernorm_f32(enc_ref[0], gg_ref[0], gb_ref[0])
    g = jnp.dot(y.astype(gw_ref.dtype), gw_ref[...],
                preferred_element_type=jnp.float32)
    g = g + gbias_ref[0].astype(jnp.float32)
    out_ref[0] = g.astype(out_ref.dtype)


# ----------------------------------------------------------------------------
# Kernel 2 (one grid step = one (batch, T-tile)):
#   query_node = graph_probs_tile @ encoder_output     (stays in VMEM, f32 acc)
#   q_proj     = Linear(LayerNorm(query_node))
#   out_tile   = q_proj  ·  g_projᵀ                     (q·kᵀ pattern, no transpose)
# ----------------------------------------------------------------------------
def _rnova_head_kernel(gp_ref, enc_ref, gproj_ref,
                       qg_ref, qb_ref, qw_ref, qbias_ref,
                       out_ref):
    # --- query_node = graph_probs @ encoder_output (bf16 operands, f32 acc) ---
    query_node = jnp.dot(gp_ref[0], enc_ref[0],
                         preferred_element_type=jnp.float32)

    # TODO(synk): RNovaDecoder definition is not in the provided source; the
    # call `query_node = self.decoder(query_node, step_mass, pos,
    # encoder_output, peak_mzs)` is treated as an identity pass-through here.

    # --- query_node_linear: LayerNorm (f32 stats) + Linear ---
    y = _layernorm_f32(query_node, qg_ref[0], qb_ref[0])
    q = jnp.dot(y.astype(qw_ref.dtype), qw_ref[...],
                preferred_element_type=jnp.float32)
    q = q + qbias_ref[0].astype(jnp.float32)

    # --- graph_probability tile = q_proj @ g_projᵀ ---
    # Contract the shared hidden axis (last dim of both) — the standard
    # flash-attention q·kᵀ pattern; the MXU consumes this natively, no per-tile
    # XLU transpose is materialized.
    out = jax.lax.dot_general(
        q.astype(gproj_ref.dtype), gproj_ref[0],
        dimension_numbers=(((1,), (1,)), ((), ())),
        preferred_element_type=jnp.float32,
    )
    out_ref[0] = out.astype(out_ref.dtype)


# ----------------------------------------------------------------------------
# Wrapper: dtype policy, padding, VMEM-derived tiling, two pallas_calls.
# ----------------------------------------------------------------------------
def rnova_forward_optimal_path(encoder_output, graph_probs, params, *,
                               t_tile_max=256, out_dtype=None,
                               mm_dtype=jnp.bfloat16,
                               single_buffer_enc=False):
    """
    encoder_output : [B, N, He]   (output of RNovaEncoder -- external module)
    graph_probs    : [B, T, N]
    params         : dict of LayerNorm/Linear params; Linear weights stored
                     (in, out) so y = x @ W + b == torch nn.Linear.
    returns graph_probability : [B, T, N]  (bf16 by default)
    """
    B, T, N = graph_probs.shape
    B2, N2, He = encoder_output.shape
    assert B == B2 and N == N2
    Hd = params["q_w"].shape[1]
    assert params["q_w"].shape == (Hd, Hd)
    assert params["g_w"].shape == (He, Hd)
    # Decoder is identity here, so query_node keeps the encoder hidden size.
    assert He == Hd, "identity-decoder path requires encoder/decoder hidden equal"

    out_dtype = jnp.bfloat16 if out_dtype is None else out_dtype
    in_b = jnp.dtype(mm_dtype).itemsize
    out_b = jnp.dtype(out_dtype).itemsize

    # N padded to a multiple of 128: lane-dense stores + clean MXU tiles.
    # (zero-padded rows only pollute padded output columns, sliced off below)
    Npad = _round_up(N, 128)

    # --- VMEM-derived T tile --------------------------------------------------
    vmem_cap = _vmem_capacity_bytes()                       # 128 MiB v5e/v6e, 64 MiB v7x
    vmem_budget = max(32 * 1024 * 1024,
                      min(int(vmem_cap * 0.75), 100 * 1024 * 1024))

    def _vmem_estimate(tt):
        buf = 2 * tt * Npad * in_b            # graph_probs tile (double-buffered)
        buf += (1 if single_buffer_enc else 2) * Npad * He * in_b   # encoder block
        buf += 2 * Npad * Hd * in_b           # g_proj block
        buf += 2 * tt * Npad * out_b          # output tile
        buf += tt * (He + Hd) * 4             # f32 query_node / q_proj temps
        buf += tt * Npad * 4                  # f32 pre-cast output
        return int(buf * 1.3)                 # headroom for layout/packing

    tT_cap = max(16, (t_tile_max // 16) * 16)               # bf16: 16-row sublane packing
    tT = min(_round_up(T, 16), tT_cap)
    while tT > 16 and _vmem_estimate(tT) > vmem_budget:
        tT -= 16
    Tpad = _round_up(T, tT)                                  # tT divides Tpad exactly
    nT = Tpad // tT

    # --- bf16 operands at the boundary; pad ------------------------------------
    gp = graph_probs.astype(mm_dtype)
    enc = encoder_output.astype(mm_dtype)
    if (Tpad, Npad) != (T, N):
        gp = jnp.pad(gp, ((0, 0), (0, Tpad - T), (0, Npad - N)))
    if Npad != N:
        enc = jnp.pad(enc, ((0, 0), (0, Npad - N), (0, 0)))

    q_gamma = params["q_gamma"]; q_beta = params["q_beta"]
    q_w = params["q_w"].astype(mm_dtype); q_b = params["q_b"]
    g_gamma = params["g_gamma"]; g_beta = params["g_beta"]
    g_w = params["g_w"].astype(mm_dtype); g_b = params["g_b"]

    def _param_spec(p):
        nd = p.ndim
        return pl.BlockSpec(p.shape, lambda *gi, _nd=nd: (0,) * _nd)

    # --- stage 1: g_proj = Linear(LayerNorm(encoder_output)), once per batch ---
    gproj = pl.pallas_call(
        _graph_node_kernel,
        out_shape=jax.ShapeDtypeStruct((B, Npad, Hd), mm_dtype),
        grid=(B,),
        in_specs=[
            pl.BlockSpec((1, Npad, He), lambda b: (b, 0, 0)),
            _param_spec(g_gamma), _param_spec(g_beta),
            _param_spec(g_w), _param_spec(g_b),
        ],
        out_specs=pl.BlockSpec((1, Npad, Hd), lambda b: (b, 0, 0)),
        compiler_params=pltpu.CompilerParams(
            dimension_semantics=("parallel",),
        ),
    )(enc, g_gamma, g_beta, g_w, g_b)

    # --- stage 2: fused query path + final contraction -------------------------
    flops = 2 * B * (Tpad * Npad * He        # graph_probs @ encoder_output
                     + Tpad * Hd * Hd        # query_node_linear
                     + Tpad * Npad * Hd)     # q_proj @ g_projᵀ
    bytes_accessed = (B * Tpad * Npad * in_b           # graph_probs
                      + B * Npad * He * in_b           # encoder_output
                      + B * Npad * Hd * in_b           # g_proj
                      + B * Tpad * Npad * out_b        # output
                      + sum(int(p.size * p.dtype.itemsize)
                            for p in (q_gamma, q_beta, q_w, q_b)))
    cost = pl.CostEstimate(flops=int(flops),
                           transcendentals=int(B * Tpad),
                           bytes_accessed=int(bytes_accessed))

    # encoder_output only changes with the batch index; on VMEM-tight chips
    # (v7x, 64 MiB) it can be single-buffered to halve its footprint.
    if single_buffer_enc:
        enc_spec = pl.BlockSpec((1, Npad, He), lambda b, t: (b, 0, 0),
                                pipeline_mode=pl.Buffered(1))
    else:
        enc_spec = pl.BlockSpec((1, Npad, He), lambda b, t: (b, 0, 0))

    out = pl.pallas_call(
        _rnova_head_kernel,
        out_shape=jax.ShapeDtypeStruct((B, Tpad, Npad), out_dtype),
        grid=(B, nT),
        in_specs=[
            pl.BlockSpec((1, tT, Npad), lambda b, t: (b, t, 0)),   # graph_probs tile
            enc_spec,                                              # encoder_output (per batch)
            pl.BlockSpec((1, Npad, Hd), lambda b, t: (b, 0, 0)),   # g_proj (per batch)
            _param_spec(q_gamma), _param_spec(q_beta),
            _param_spec(q_w), _param_spec(q_b),
        ],
        out_specs=pl.BlockSpec((1, tT, Npad), lambda b, t: (b, t, 0)),
        compiler_params=pltpu.CompilerParams(
            # g_proj is precomputed, so no cross-iteration scratch dependence:
            # both axes are safely "parallel" (megacore can split T tiles too).
            dimension_semantics=("parallel", "parallel"),
            vmem_limit_bytes=int(vmem_budget),
        ),
        cost_estimate=cost,
    )(gp, enc, gproj, q_gamma, q_beta, q_w, q_b)

    return out[:, :T, :N]


# ----------------------------------------------------------------------------
# Plain-JAX f32 reference for correctness checking.
# ----------------------------------------------------------------------------
def _reference(encoder_output, graph_probs, params):
    qn = jnp.einsum("btn,bnh->bth", graph_probs, encoder_output)

    def ln_linear(x, gamma, beta, w, bias):
        mu = jnp.mean(x, axis=-1, keepdims=True)
        var = jnp.mean((x - mu) ** 2, axis=-1, keepdims=True)
        xn = (x - mu) / jnp.sqrt(var + _LN_EPS)
        return (xn * gamma[0] + beta[0]) @ w + bias[0]

    q = ln_linear(qn, params["q_gamma"], params["q_beta"], params["q_w"], params["q_b"])
    g = ln_linear(encoder_output, params["g_gamma"], params["g_beta"],
                  params["g_w"], params["g_b"])
    return jnp.einsum("btd,bnd->btn", q, g)


if __name__ == "__main__":
    # Small shapes implied by the forward pass:
    #   B = batch, N = graph nodes (peaks), T = decoder query steps,
    #   He = encoder hidden, Hd = decoder hidden (equal; decoder is identity).
    B, N, T, He, Hd = 2, 16, 8, 32, 32

    key = jax.random.PRNGKey(0)
    k_enc, k_gp, k1, k2, k3, k4 = jax.random.split(key, 6)

    # encoder_output stands in for RNovaEncoder(...) output (definition not provided).
    encoder_output = jax.random.normal(k_enc, (B, N, He), dtype=jnp.float32)
    graph_probs = jax.nn.softmax(
        jax.random.normal(k_gp, (B, T, N), dtype=jnp.float32), axis=-1
    )

    # Linear weights stored as (in, out) so that y = x @ W + b == torch Linear.
    params = {
        # query_node_linear = LayerNorm(Hd) -> Linear(Hd, Hd)
        "q_gamma": jnp.ones((1, Hd), jnp.float32),
        "q_beta": jnp.zeros((1, Hd), jnp.float32),
        "q_w": 0.05 * jax.random.normal(k1, (Hd, Hd), dtype=jnp.float32),
        "q_b": 0.01 * jax.random.normal(k2, (1, Hd), dtype=jnp.float32),
        # graph_node_linear = LayerNorm(He) -> Linear(He, Hd)
        "g_gamma": jnp.ones((1, He), jnp.float32),
        "g_beta": jnp.zeros((1, He), jnp.float32),
        "g_w": 0.05 * jax.random.normal(k3, (He, Hd), dtype=jnp.float32),
        "g_b": 0.01 * jax.random.normal(k4, (1, Hd), dtype=jnp.float32),
    }

    ref = _reference(encoder_output, graph_probs, params)

    # --- check 1: default config (bf16 operands + bf16 output) ---
    out = rnova_forward_optimal_path(encoder_output, graph_probs, params)
    out = jax.block_until_ready(out)
    assert out.shape == (B, T, N), out.shape
    assert jnp.allclose(out.astype(jnp.float32), ref, atol=4e-2, rtol=4e-2), float(
        jnp.max(jnp.abs(out.astype(jnp.float32) - ref)))

    # --- check 2: exercise T tiling / padding and the precomputed g_proj path ---
    T2 = 20
    graph_probs2 = jax.nn.softmax(
        jax.random.normal(jax.random.PRNGKey(1), (B, T2, N), dtype=jnp.float32),
        axis=-1,
    )
    out2 = rnova_forward_optimal_path(encoder_output, graph_probs2, params,
                                      t_tile_max=16)
    out2 = jax.block_until_ready(out2)
    ref2 = _reference(encoder_output, graph_probs2, params)
    assert out2.shape == (B, T2, N), out2.shape
    assert jnp.allclose(out2.astype(jnp.float32), ref2, atol=4e-2, rtol=4e-2), float(
        jnp.max(jnp.abs(out2.astype(jnp.float32) - ref2)))

    print("KERNEL_OK")
</pallas_src>

<mosaic_0001>
module attributes {stable_mosaic.version = 11 : i64} {
  func.func @_graph_node_kernel(%arg0: i32, %arg1: memref<1x128x32xbf16, #tpu.memory_space<vmem>>, %arg2: memref<1x32xf32, #tpu.memory_space<vmem>>, %arg3: memref<1x32xf32, #tpu.memory_space<vmem>>, %arg4: memref<32x32xbf16, #tpu.memory_space<vmem>>, %arg5: memref<1x32xf32, #tpu.memory_space<vmem>>, %arg6: memref<1x128x32xbf16, #tpu.memory_space<vmem>>) attributes {dimension_semantics = [#tpu.dimension_semantics<parallel>], iteration_bounds = array<i64: 2>, scalar_prefetch = 0 : i64, scratch_operands = 0 : i64, tpu.core_type = #tpu.core_type<tc>, window_params = [{transform_indices = @transform_0, window_bounds = array<i64: 1, 128, 32>}, {pipeline_mode = #tpu.pipeline_mode<synchronous>, transform_indices = @transform_1, window_bounds = array<i64: 1, 32>}, {pipeline_mode = #tpu.pipeline_mode<synchronous>, transform_indices = @transform_2, window_bounds = array<i64: 1, 32>}, {pipeline_mode = #tpu.pipeline_mode<synchronous>, transform_indices = @transform_3, window_bounds = array<i64: 32, 32>}, {pipeline_mode = #tpu.pipeline_mode<synchronous>, transform_indices = @transform_4, window_bounds = array<i64: 1, 32>}, {transform_indices = @transform_5, window_bounds = array<i64: 1, 128, 32>}]} {
    %c0 = arith.constant 0 : index
    %c0_0 = arith.constant 0 : index
    %c0_1 = arith.constant 0 : index
    %0 = vector.load %arg1[%c0, %c0_0, %c0_1] : memref<1x128x32xbf16, #tpu.memory_space<vmem>>, vector<1x128x32xbf16>
    %1 = vector.shape_cast %0 : vector<1x128x32xbf16> to vector<128x32xbf16>
    %c0_2 = arith.constant 0 : index
    %c0_3 = arith.constant 0 : index
    %2 = vector.load %arg2[%c0_2, %c0_3] : memref<1x32xf32, #tpu.memory_space<vmem>>, vector<1x32xf32>
    %3 = vector.shape_cast %2 : vector<1x32xf32> to vector<32xf32>
    %c0_4 = arith.constant 0 : index
    %c0_5 = arith.constant 0 : index
    %4 = vector.load %arg3[%c0_4, %c0_5] : memref<1x32xf32, #tpu.memory_space<vmem>>, vector<1x32xf32>
    %5 = vector.shape_cast %4 : vector<1x32xf32> to vector<32xf32>
    %6 = arith.extf %1 : vector<128x32xbf16> to vector<128x32xf32>
    %cst = arith.constant dense<0.000000e+00> : vector<128xf32>
    %7 = vector.multi_reduction <add>, %6, %cst [1] : vector<128x32xf32> to vector<128xf32>
    %8 = vector.shape_cast %7 : vector<128xf32> to vector<128x1xf32>
    %cst_6 = arith.constant 3.200000e+01 : f32
    %9 = vector.broadcast %cst_6 : f32 to vector<128x1xf32>
    %10 = arith.divf %8, %9 : vector<128x1xf32>
    %11 = arith.mulf %6, %6 : vector<128x32xf32>
    %cst_7 = arith.constant dense<0.000000e+00> : vector<128xf32>
    %12 = vector.multi_reduction <add>, %11, %cst_7 [1] : vector<128x32xf32> to vector<128xf32>
    %13 = vector.shape_cast %12 : vector<128xf32> to vector<128x1xf32>
    %cst_8 = arith.constant 3.200000e+01 : f32
    %14 = vector.broadcast %cst_8 : f32 to vector<128x1xf32>
    %15 = arith.divf %13, %14 : vector<128x1xf32>
    %16 = arith.mulf %10, %10 : vector<128x1xf32>
    %17 = arith.subf %15, %16 : vector<128x1xf32>
    %cst_9 = arith.constant 0.000000e+00 : f32
    %18 = vector.broadcast %cst_9 : f32 to vector<128x1xf32>
    %19 = arith.maximumf %17, %18 : vector<128x1xf32>
    %20 = vector.broadcast %10 : vector<128x1xf32> to vector<128x32xf32>
    %21 = arith.subf %6, %20 : vector<128x32xf32>
    %cst_10 = arith.constant 9.99999974E-6 : f32
    %22 = vector.broadcast %cst_10 : f32 to vector<128x1xf32>
    %23 = arith.addf %19, %22 : vector<128x1xf32>
    %24 = math.rsqrt %23 : vector<128x1xf32>
    %25 = vector.broadcast %24 : vector<128x1xf32> to vector<128x32xf32>
    %26 = arith.mulf %21, %25 : vector<128x32xf32>
    %27 = vector.shape_cast %3 : vector<32xf32> to vector<1x32xf32>
    %28 = vector.broadcast %27 : vector<1x32xf32> to vector<128x32xf32>
    %29 = arith.mulf %26, %28 : vector<128x32xf32>
    %30 = vector.shape_cast %5 : vector<32xf32> to vector<1x32xf32>
    %31 = vector.broadcast %30 : vector<1x32xf32> to vector<128x32xf32>
    %32 = arith.addf %29, %31 : vector<128x32xf32>
    %33 = arith.truncf %32 : vector<128x32xf32> to vector<128x32xbf16>
    %c0_11 = arith.constant 0 : index
    %c0_12 = arith.constant 0 : index
    %34 = vector.load %arg4[%c0_11, %c0_12] : memref<32x32xbf16, #tpu.memory_space<vmem>>, vector<32x32xbf16>
    %cst_13 = arith.constant dense<0.000000e+00> : vector<128x32xf32>
    %35 = tpu.matmul %33, %34, %cst_13 {dimension_numbers = #tpu.dot_dimension_numbers<[1], [0], [0], [1], [0, 0, 1, 1], [], []>} : vector<128x32xbf16>, vector<32x32xbf16>, vector<128x32xf32> -> vector<128x32xf32>
    %c0_14 = arith.constant 0 : index
    %c0_15 = arith.constant 0 : index
    %36 = vector.load %arg5[%c0_14, %c0_15] : memref<1x32xf32, #tpu.memory_space<vmem>>, vector<1x32xf32>
    %37 = vector.shape_cast %36 : vector<1x32xf32> to vector<32xf32>
    %38 = vector.shape_cast %37 : vector<32xf32> to vector<1x32xf32>
    %39 = vector.broadcast %38 : vector<1x32xf32> to vector<128x32xf32>
    %40 = arith.addf %35, %39 : vector<128x32xf32>
    %41 = arith.truncf %40 : vector<128x32xf32> to vector<128x32xbf16>
    %c0_16 = arith.constant 0 : index
    %c0_17 = arith.constant 0 : index
    %c0_18 = arith.constant 0 : index
    %42 = vector.load %arg6[%c0_16, %c0_17, %c0_18] : memref<1x128x32xbf16, #tpu.memory_space<vmem>>, vector<1x128x32xbf16>
    %43 = vector.shape_cast %42 : vector<1x128x32xbf16> to vector<128x32xbf16>
    %44 = vector.shape_cast %41 : vector<128x32xbf16> to vector<1x128x32xbf16>
    tpu.vector_store %arg6[%c0_16, %c0_17, %c0_18], %44 {strides = array<i32>} : memref<1x128x32xbf16, #tpu.memory_space<vmem>>, vector<1x128x32xbf16>,
    return
  }
  func.func @transform_0(%arg0: i32) -> (i32, i32, i32) {
    %c0_i32 = arith.constant 0 : i32
    %c0_i32_0 = arith.constant 0 : i32
    %c0_i32_1 = arith.constant 0 : i32
    return %arg0, %c0_i32, %c0_i32_0 : i32, i32, i32
  }
  func.func @transform_1(%arg0: i32) -> (i32, i32) {
    %c0_i32 = arith.constant 0 : i32
    %c0_i32_0 = arith.constant 0 : i32
    %c0_i32_1 = arith.constant 0 : i32
    return %c0_i32, %c0_i32_0 : i32, i32
  }
  func.func @transform_2(%arg0: i32) -> (i32, i32) {
    %c0_i32 = arith.constant 0 : i32
    %c0_i32_0 = arith.constant 0 : i32
    %c0_i32_1 = arith.constant 0 : i32
    return %c0_i32, %c0_i32_0 : i32, i32
  }
  func.func @transform_3(%arg0: i32) -> (i32, i32) {
    %c0_i32 = arith.constant 0 : i32
    %c0_i32_0 = arith.constant 0 : i32
    %c0_i32_1 = arith.constant 0 : i32
    return %c0_i32, %c0_i32_0 : i32, i32
  }
  func.func @transform_4(%arg0: i32) -> (i32, i32) {
    %c0_i32 = arith.constant 0 : i32
    %c0_i32_0 = arith.constant 0 : i32
    %c0_i32_1 = arith.constant 0 : i32
    return %c0_i32, %c0_i32_0 : i32, i32
  }
  func.func @transform_5(%arg0: i32) -> (i32, i32, i32) {
    %c0_i32 = arith.constant 0 : i32
    %c0_i32_0 = arith.constant 0 : i32
    %c0_i32_1 = arith.constant 0 : i32
    return %arg0, %c0_i32, %c0_i32_0 : i32, i32, i32
  }
}

</mosaic_0001>

<llo_original>
// kernel: tpu_custom_call.1
$region0: #{tpu_custom_call.1}
  #allocation0 [shape = 'u32[]', space=smem, size = 0x4, offset = 0x4, fixed_abs, tag = 'smem constant byte address 0x4 - core index']
  #allocation1 [shape = 'u32[144,128]{1,0:T(1,128)}', space=vmem, size = 0x12000, scoped, tag = 'internal scratch']
  %s0 = inlined_call_operand.vmem [shape: bf16[2,128,32], index: 0, kind: input, shape index: {}]
  %s1 = inlined_call_operand.vmem [shape: f32[1,32], index: 1, kind: input, shape index: {}]
  %s2 = inlined_call_operand.vmem [shape: f32[1,32], index: 2, kind: input, shape index: {}]
  %s3 = inlined_call_operand.vmem [shape: bf16[32,32], index: 3, kind: input, shape index: {}]
  %s4 = inlined_call_operand.vmem [shape: f32[1,32], index: 4, kind: input, shape index: {}]
  %s5 = inlined_call_operand.vmem [shape: bf16[2,128,32], index: 5, kind: output, shape index: {}]
  %s6 = sld [smem:[#allocation0]]
  $region53: #{tpu_custom_call.1} parent=0
    _
  %s8 = ssub.s32 1, %s6
  %s9 = scalar_select 0, %s8, %s6
  loop: start=0, step=1, limit=4
  $region2: #{tpu_custom_call.1} parent=0 // loop_pre_header
    _
  $region3: #{tpu_custom_call.1} parent=0 // loop_header
    %s11 = sphi 0, %s15
    %p12 = scmp.ge.s32.totalorder %s11, 4
    %s21 = sphi 0, %s23
    %s24 = sphi 0, %s21
    %s25 = sphi 0, %s24
    %s41 = sphi 0, %s25
    %s45 = sphi 0, %s45
    %s47 = sphi 0, %s45
    %s48 = sphi 0, %s47
    %s62 = sphi 0, %s48
    %s66 = sphi 0, %s66
    %s68 = sphi 0, %s66
    %s69 = sphi 0, %s68
    %s83 = sphi 0, %s69
    %s87 = sphi 0, %s87
    %s89 = sphi 0, %s87
    %s90 = sphi 0, %s89
    %s104 = sphi 0, %s90
    %s108 = sphi 0, %s108
    %s110 = sphi 0, %s108
    %s111 = sphi 0, %s110
    %s125 = sphi 0, %s111
    %s131 = sphi 0, %s133
    %s134 = sphi 0, %s131
    %s135 = sphi 0, %s134
    %s151 = sphi 0, %s135
  $region4: #{tpu_custom_call.1} parent=0 // loop_header_branch
    %14 = sbr.rel (%p12) target = $region8
  $region5: #{tpu_custom_call.1} parent=0 // loop_body
    %s16 = ssub.s32 %s11, 1
    %s17 = ssub.s32 %s11, 2
    %s18 = sadd.s32 %s11, 1
    %s19 = ssub.s32 %s11, %s18
    %p20 = scmp.eq.s32.totalorder %s19, 0
    %s22 = sadd.s32 %s21, 1
    %s23 = scalar_select %p20, %s21, %s22
    %p26 = pneg %p20
    %p27 = scmp.eq.s32.totalorder %s11, 1
    %p28 = por %p26, %p27
    %p29 = scmp.ne.s32.totalorder %s21, %s24
    %p30 = scmp.eq.s32.totalorder %s11, 0
    %p31 = por %p29, %p30
    %p32 = scmp.ne.s32.totalorder %s21, %s24
    %p33 = scmp.eq.s32.totalorder %s16, 1
    %p34 = por %p32, %p33
    %p35 = scmp.ne.s32.totalorder %s24, %s25
    %p36 = scmp.eq.s32.totalorder %s16, 0
    %p37 = por %p35, %p36
    %p38 = scmp.ne.s32.totalorder %s24, %s25
    %p39 = scmp.eq.s32.totalorder %s17, 1
    %p40 = por %p38, %p39
    %p42 = scmp.ne.s32.totalorder %s25, %s41
    %p43 = scmp.eq.s32.totalorder %s17, 0
    %p44 = por %p42, %p43
    %s46 = sadd.s32 %s45, 1
    %p49 = scmp.eq.s32.totalorder %s11, 1
    %p50 = scmp.ne.s32.totalorder %s45, %s47
    %p51 = scmp.eq.s32.totalorder %s11, 0
    %p52 = por %p50, %p51
    %p53 = scmp.ne.s32.totalorder %s45, %s47
    %p54 = scmp.eq.s32.totalorder %s16, 1
    %p55 = por %p53, %p54
    %p56 = scmp.ne.s32.totalorder %s47, %s48
    %p57 = scmp.eq.s32.totalorder %s16, 0
    %p58 = por %p56, %p57
    %p59 = scmp.ne.s32.totalorder %s47, %s48
    %p60 = scmp.eq.s32.totalorder %s17, 1
    %p61 = por %p59, %p60
    %p63 = scmp.ne.s32.totalorder %s48, %s62
    %p64 = scmp.eq.s32.totalorder %s17, 0
    %p65 = por %p63, %p64
    %s67 = sadd.s32 %s66, 1
    %p70 = scmp.eq.s32.totalorder %s11, 1
    %p71 = scmp.ne.s32.totalorder %s66, %s68
    %p72 = scmp.eq.s32.totalorder %s11, 0
    %p73 = por %p71, %p72
    %p74 = scmp.ne.s32.totalorder %s66, %s68
    %p75 = scmp.eq.s32.totalorder %s16, 1
    %p76 = por %p74, %p75
    %p77 = scmp.ne.s32.totalorder %s68, %s69
    %p78 = scmp.eq.s32.totalorder %s16, 0
    %p79 = por %p77, %p78
    %p80 = scmp.ne.s32.totalorder %s68, %s69
    %p81 = scmp.eq.s32.totalorder %s17, 1
    %p82 = por %p80, %p81
    %p84 = scmp.ne.s32.totalorder %s69, %s83
    %p85 = scmp.eq.s32.totalorder %s17, 0
    %p86 = por %p84, %p85
    %s88 = sadd.s32 %s87, 1
    %p91 = scmp.eq.s32.totalorder %s11, 1
    %p92 = scmp.ne.s32.totalorder %s87, %s89
    %p93 = scmp.eq.s32.totalorder %s11, 0
    %p94 = por %p92, %p93
    %p95 = scmp.ne.s32.totalorder %s87, %s89
    %p96 = scmp.eq.s32.totalorder %s16, 1
    %p97 = por %p95, %p96
    %p98 = scmp.ne.s32.totalorder %s89, %s90
    %p99 = scmp.eq.s32.totalorder %s16, 0
    %p100 = por %p98, %p99
    %p101 = scmp.ne.s32.totalorder %s89, %s90
    %p102 = scmp.eq.s32.totalorder %s17, 1
    %p103 = por %p101, %p102
    %p105 = scmp.ne.s32.totalorder %s90, %s104
    %p106 = scmp.eq.s32.totalorder %s17, 0
    %p107 = por %p105, %p106
    %s109 = sadd.s32 %s108, 1
    %p112 = scmp.eq.s32.totalorder %s11, 1
    %p113 = scmp.ne.s32.totalorder %s108, %s110
    %p114 = scmp.eq.s32.totalorder %s11, 0
    %p115 = por %p113, %p114
    %p116 = scmp.ne.s32.totalorder %s108, %s110
    %p117 = scmp.eq.s32.totalorder %s16, 1
    %p118 = por %p116, %p117
    %p119 = scmp.ne.s32.totalorder %s110, %s111
    %p120 = scmp.eq.s32.totalorder %s16, 0
    %p121 = por %p119, %p120
    %p122 = scmp.ne.s32.totalorder %s110, %s111
    %p123 = scmp.eq.s32.totalorder %s17, 1
    %p124 = por %p122, %p123
    %p126 = scmp.ne.s32.totalorder %s111, %s125
    %p127 = scmp.eq.s32.totalorder %s17, 0
    %p128 = por %p126, %p127
    %s129 = ssub.s32 %s11, %s18
    %p130 = scmp.eq.s32.totalorder %s129, 0
    %s132 = sadd.s32 %s131, 1
    %s133 = scalar_select %p130, %s131, %s132
    %p136 = pneg %p130
    %p137 = scmp.eq.s32.totalorder %s11, 1
    %p138 = por %p136, %p137
    %p139 = scmp.ne.s32.totalorder %s131, %s134
    %p140 = scmp.eq.s32.totalorder %s11, 0
    %p141 = por %p139, %p140
    %p142 = scmp.ne.s32.totalorder %s131, %s134
    %p143 = scmp.eq.s32.totalorder %s16, 1
    %p144 = por %p142, %p143
    %p145 = scmp.ne.s32.totalorder %s134, %s135
    %p146 = scmp.eq.s32.totalorder %s16, 0
    %p147 = por %p145, %p146
    %p148 = scmp.ne.s32.totalorder %s134, %s135
    %p149 = scmp.eq.s32.totalorder %s17, 1
    %p150 = por %p148, %p149
    %p152 = scmp.ne.s32.totalorder %s135, %s151
    %p153 = scmp.eq.s32.totalorder %s17, 0
    %p154 = por %p152, %p153
    %p155 = scmp.le.s32.totalorder 1, %s11
    %p156 = scmp.lt.s32.totalorder %s11, 3
    %p157 = pnand %p155, %p156
    %p158 = pneg %p157
    // Predicated region
    $region9: #{tpu_custom_call.1} parent=5 // pred_check
      _
    $region10: #{tpu_custom_call.1} parent=5 // pred_check_branch
      %160 = sbr.rel (%p157) target = $region12
    $region11: #{tpu_custom_call.1} parent=5 // pred_region
      %s161 = ssub.s32 %s11, 1
      // Predicated region
      $region13: #{tpu_custom_call.1} parent=11 // pred_check
        %p162 = pneg %p58
      $region14: #{tpu_custom_call.1} parent=11 // pred_check_branch
        %164 = sbr.rel (%p162) target = $region16
      $region15: #{tpu_custom_call.1} parent=11 // pred_region
        _
      $region16: #{tpu_custom_call.1} parent=11 // pred_fallthru
        _
      // Predicated region
      $region17: #{tpu_custom_call.1} parent=11 // pred_check
        %p165 = pneg %p79
      $region18: #{tpu_custom_call.1} parent=11 // pred_check_branch
        %167 = sbr.rel (%p165) target = $region20
      $region19: #{tpu_custom_call.1} parent=11 // pred_region
        _
      $region20: #{tpu_custom_call.1} parent=11 // pred_fallthru
        _
      // Predicated region
      $region21: #{tpu_custom_call.1} parent=11 // pred_check
        %p168 = pneg %p100
      $region22: #{tpu_custom_call.1} parent=11 // pred_check_branch
        %170 = sbr.rel (%p168) target = $region24
      $region23: #{tpu_custom_call.1} parent=11 // pred_region
        _
      $region24: #{tpu_custom_call.1} parent=11 // pred_fallthru
        _
      // Predicated region
      $region25: #{tpu_custom_call.1} parent=11 // pred_check
        %p171 = pneg %p121
      $region26: #{tpu_custom_call.1} parent=11 // pred_check_branch
        %173 = sbr.rel (%p171) target = $region28
      $region27: #{tpu_custom_call.1} parent=11 // pred_region
        _
      $region28: #{tpu_custom_call.1} parent=11 // pred_fallthru
        _
    $region12: #{tpu_custom_call.1} parent=5 // pred_fallthru
      _
    %p174 = scmp.lt.s32.totalorder %s11, 2
    // Predicated region
    $region29: #{tpu_custom_call.1} parent=5 // pred_check
      %p175 = pneg %p174
    $region30: #{tpu_custom_call.1} parent=5 // pred_check_branch
      %177 = sbr.rel (%p175) target = $region32
    $region31: #{tpu_custom_call.1} parent=5 // pred_region
      // Predicated region
      $region33: #{tpu_custom_call.1} parent=31 // pred_check
        %p178 = pneg %p31
      $region34: #{tpu_custom_call.1} parent=31 // pred_check_branch
        %180 = sbr.rel (%p178) target = $region36
      $region35: #{tpu_custom_call.1} parent=31 // pred_region
        %p181 = scmp.lt.s32.totalorder %s11, 1
        %s182 = scalar_select %p181, %s11, 1
        %s183 = smul.addr %s182, 16
        %s184 = smul.addr %s183, 4
        %s185 = scalar_lea.vmem %s0, %s184
      $region36: #{tpu_custom_call.1} parent=31 // pred_fallthru
        _
    $region32: #{tpu_custom_call.1} parent=5 // pred_fallthru
      _
    %p186 = scmp.le.s32.totalorder 1, %s11
    %p187 = scmp.lt.s32.totalorder %s11, 3
    %p188 = pnand %p186, %p187
    %p189 = pneg %p188
    // Predicated region
    $region37: #{tpu_custom_call.1} parent=5 // pred_check
      _
    $region38: #{tpu_custom_call.1} parent=5 // pred_check_branch
      %191 = sbr.rel (%p188) target = $region40
    $region39: #{tpu_custom_call.1} parent=5 // pred_region
      %s192 = ssub.s32 %s11, 1
      %p193 = scmp.lt.s32.totalorder %s16, 1
      %s194 = scalar_select %p193, %s16, 1
      %s195 = smul.addr %s194, 16
      %s196 = smul.addr %s195, 4
      %s197 = scalar_lea.vmem %s0, %s196
      %p198 = pneg %p37
      %p199 = pneg %p34
      %p200 = pneg %p58
      %p201 = pneg %p55
      %p202 = pneg %p79
      %p203 = pneg %p76
      %p204 = pneg %p100
      %p205 = pneg %p97
      %p206 = pneg %p121
      %p207 = pneg %p118
      %p208 = pneg %p147
      %p209 = pneg %p144
      %p210 = scmp.lt.s32.totalorder %s16, 1
      %s211 = scalar_select %p210, %s16, 1
      %s212 = smul.addr %s211, 16
      %s213 = smul.addr %s212, 4
      %s214 = scalar_lea.vmem %s5, %s213
      %p215 = scmp.lt.s32.totalorder %s16, 1
      %s216 = scalar_select %p215, %s16, 1
      %s217 = smul.addr %s216, 16
      %s218 = smul.addr %s217, 4
      %s219 = scalar_lea.vmem %s0, %s218
      %p220 = scmp.lt.s32.totalorder %s16, 1
      %s221 = scalar_select %p220, %s16, 1
      %s222 = smul.addr %s221, 16
      %s223 = smul.addr %s222, 4
      %s224 = scalar_lea.vmem %s5, %s223
      %v226 = vld [vmem:[%s219] sm:$0xf]
      %v227 = vld [vmem:[%s219 + $0x4] sm:$0xf]
      %v228 = vld [vmem:[%s219 + $0x8] sm:$0xf]
      %v229 = vld [vmem:[%s219 + $0xc] sm:$0xf]
      %v230 = vld [vmem:[%s219 + $0x10] sm:$0xf]
      %v231 = vld [vmem:[%s219 + $0x14] sm:$0xf]
      %v232 = vld [vmem:[%s219 + $0x18] sm:$0xf]
      %v233 = vld [vmem:[%s219 + $0x1c] sm:$0xf]
      %v234 = vld [vmem:[%s219 + $0x20] sm:$0xf]
      %v235 = vld [vmem:[%s219 + $0x24] sm:$0xf]
      %v236 = vld [vmem:[%s219 + $0x28] sm:$0xf]
      %v237 = vld [vmem:[%s219 + $0x2c] sm:$0xf]
      %v238 = vld [vmem:[%s219 + $0x30] sm:$0xf]
      %v239 = vld [vmem:[%s219 + $0x34] sm:$0xf]
      %v240 = vld [vmem:[%s219 + $0x38] sm:$0xf]
      %v241 = vld [vmem:[%s219 + $0x3c] sm:$0xf]
      %v242 = vld [vmem:[%s1] sm:$0x1]
      %v243 = vld [vmem:[%s2] sm:$0x1]
      %v244 = vunpack.c.l.bf16 %v226
      %v245 = vunpack.c.l.bf16 %v227
      %v246 = vunpack.c.l.bf16 %v228
      %v247 = vunpack.c.l.bf16 %v229
      %v248 = vunpack.c.l.bf16 %v230
      %v249 = vunpack.c.l.bf16 %v231
      %v250 = vunpack.c.l.bf16 %v232
      %v251 = vunpack.c.l.bf16 %v233
      %v252 = vunpack.c.l.bf16 %v234
      %v253 = vunpack.c.l.bf16 %v235
      %v254 = vunpack.c.l.bf16 %v236
      %v255 = vunpack.c.l.bf16 %v237
      %v256 = vunpack.c.l.bf16 %v238
      %v257 = vunpack.c.l.bf16 %v239
      %v258 = vunpack.c.l.bf16 %v240
      %v259 = vunpack.c.l.bf16 %v241
      %vm260 = vcmask 261120
      %v261 = vsel %vm260, %v244, 0.0
      %262 = vadd.xlane.f32.xlu0 %v261
      %v263 = vpop.xlane.xlu0 %262
      %v264 = vsel %vm260, %v245, 0.0
      %265 = vadd.xlane.f32.xlu0 %v264
      %v266 = vpop.xlane.xlu0 %265
      %v267 = vsel %vm260, %v246, 0.0
      %268 = vadd.xlane.f32.xlu0 %v267
      %v269 = vpop.xlane.xlu0 %268
      %v270 = vsel %vm260, %v247, 0.0
      %271 = vadd.xlane.f32.xlu0 %v270
      %v272 = vpop.xlane.xlu0 %271
      %v273 = vsel %vm260, %v248, 0.0
      %274 = vadd.xlane.f32.xlu0 %v273
      %v275 = vpop.xlane.xlu0 %274
      %v276 = vsel %vm260, %v249, 0.0
      %277 = vadd.xlane.f32.xlu0 %v276
      %v278 = vpop.xlane.xlu0 %277
      %v279 = vsel %vm260, %v250, 0.0
      %280 = vadd.xlane.f32.xlu0 %v279
      %v281 = vpop.xlane.xlu0 %280
      %v282 = vsel %vm260, %v251, 0.0
      %283 = vadd.xlane.f32.xlu0 %v282
      %v284 = vpop.xlane.xlu0 %283
      %v285 = vsel %vm260, %v252, 0.0
      %286 = vadd.xlane.f32.xlu0 %v285
      %v287 = vpop.xlane.xlu0 %286
      %v288 = vsel %vm260, %v253, 0.0
      %289 = vadd.xlane.f32.xlu0 %v288
      %v290 = vpop.xlane.xlu0 %289
      %v291 = vsel %vm260, %v254, 0.0
      %292 = vadd.xlane.f32.xlu0 %v291
      %v293 = vpop.xlane.xlu0 %292
      %v294 = vsel %vm260, %v255, 0.0
      %295 = vadd.xlane.f32.xlu0 %v294
      %v296 = vpop.xlane.xlu0 %295
      %v297 = vsel %vm260, %v256, 0.0
      %298 = vadd.xlane.f32.xlu0 %v297
      %v299 = vpop.xlane.xlu0 %298
      %v300 = vsel %vm260, %v257, 0.0
      %301 = vadd.xlane.f32.xlu0 %v300
      %v302 = vpop.xlane.xlu0 %301
      %v303 = vsel %vm260, %v258, 0.0
      %304 = vadd.xlane.f32.xlu0 %v303
      %v305 = vpop.xlane.xlu0 %304
      %v306 = vsel %vm260, %v259, 0.0
      %307 = vadd.xlane.f32.xlu0 %v306
      %v308 = vpop.xlane.xlu0 %307
      %v309 = vrcp.pop 32.0
      %v310 = vmul.f32 %v263, %v309
      %v311 = vmul.f32 %v266, %v309
      %v312 = vmul.f32 %v269, %v309
      %v313 = vmul.f32 %v272, %v309
      %v314 = vmul.f32 %v275, %v309
      %v315 = vmul.f32 %v278, %v309
      %v316 = vmul.f32 %v281, %v309
      %v317 = vmul.f32 %v284, %v309
      %v318 = vmul.f32 %v287, %v309
      %v319 = vmul.f32 %v290, %v309
      %v320 = vmul.f32 %v293, %v309
      %v321 = vmul.f32 %v296, %v309
      %v322 = vmul.f32 %v299, %v309
      %v323 = vmul.f32 %v302, %v309
      %v324 = vmul.f32 %v305, %v309
      %v325 = vmul.f32 %v308, %v309
      %v326 = vmul.f32 %v244, %v244
      %v327 = vmul.f32 %v245, %v245
      %v328 = vmul.f32 %v246, %v246
      %v329 = vmul.f32 %v247, %v247
      %v330 = vmul.f32 %v248, %v248
      %v331 = vmul.f32 %v249, %v249
      %v332 = vmul.f32 %v250, %v250
      %v333 = vmul.f32 %v251, %v251
      %v334 = vmul.f32 %v252, %v252
      %v335 = vmul.f32 %v253, %v253
      %v336 = vmul.f32 %v254, %v254
      %v337 = vmul.f32 %v255, %v255
      %v338 = vmul.f32 %v256, %v256
      %v339 = vmul.f32 %v257, %v257
      %v340 = vmul.f32 %v258, %v258
      %v341 = vmul.f32 %v259, %v259
      %v342 = vsel %vm260, %v326, 0.0
      %343 = vadd.xlane.f32.xlu0 %v342
      %v344 = vpop.xlane.xlu0 %343
      %v345 = vsel %vm260, %v327, 0.0
      %346 = vadd.xlane.f32.xlu0 %v345
      %v347 = vpop.xlane.xlu0 %346
      %v348 = vsel %vm260, %v328, 0.0
      %349 = vadd.xlane.f32.xlu0 %v348
      %v350 = vpop.xlane.xlu0 %349
      %v351 = vsel %vm260, %v329, 0.0
      %352 = vadd.xlane.f32.xlu0 %v351
      %v353 = vpop.xlane.xlu0 %352
      %v354 = vsel %vm260, %v330, 0.0
      %355 = vadd.xlane.f32.xlu0 %v354
      %v356 = vpop.xlane.xlu0 %355
      %v357 = vsel %vm260, %v331, 0.0
      %358 = vadd.xlane.f32.xlu0 %v357
      %v359 = vpop.xlane.xlu0 %358
      %v360 = vsel %vm260, %v332, 0.0
      %361 = vadd.xlane.f32.xlu0 %v360
      %v362 = vpop.xlane.xlu0 %361
      %v363 = vsel %vm260, %v333, 0.0
      %364 = vadd.xlane.f32.xlu0 %v363
      %v365 = vpop.xlane.xlu0 %364
      %v366 = vsel %vm260, %v334, 0.0
      %367 = vadd.xlane.f32.xlu0 %v366
      %v368 = vpop.xlane.xlu0 %367
      %v369 = vsel %vm260, %v335, 0.0
      %370 = vadd.xlane.f32.xlu0 %v369
      %v371 = vpop.xlane.xlu0 %370
      %v372 = vsel %vm260, %v336, 0.0
      %373 = vadd.xlane.f32.xlu0 %v372
      %v374 = vpop.xlane.xlu0 %373
      %v375 = vsel %vm260, %v337, 0.0
      %376 = vadd.xlane.f32.xlu0 %v375
      %v377 = vpop.xlane.xlu0 %376
      %v378 = vsel %vm260, %v338, 0.0
      %379 = vadd.xlane.f32.xlu0 %v378
      %v380 = vpop.xlane.xlu0 %379
      %v381 = vsel %vm260, %v339, 0.0
      %382 = vadd.xlane.f32.xlu0 %v381
      %v383 = vpop.xlane.xlu0 %382
      %v384 = vsel %vm260, %v340, 0.0
      %385 = vadd.xlane.f32.xlu0 %v384
      %v386 = vpop.xlane.xlu0 %385
      %v387 = vsel %vm260, %v341, 0.0
      %388 = vadd.xlane.f32.xlu0 %v387
      %v389 = vpop.xlane.xlu0 %388
      %v390 = vmul.f32 %v344, %v309
      %v391 = vmul.f32 %v347, %v309
      %v392 = vmul.f32 %v350, %v309
      %v393 = vmul.f32 %v353, %v309
      %v394 = vmul.f32 %v356, %v309
      %v395 = vmul.f32 %v359, %v309
      %v396 = vmul.f32 %v362, %v309
      %v397 = vmul.f32 %v365, %v309
      %v398 = vmul.f32 %v368, %v309
      %v399 = vmul.f32 %v371, %v309
      %v400 = vmul.f32 %v374, %v309
      %v401 = vmul.f32 %v377, %v309
      %v402 = vmul.f32 %v380, %v309
      %v403 = vmul.f32 %v383, %v309
      %v404 = vmul.f32 %v386, %v309
      %v405 = vmul.f32 %v389, %v309
      %v406 = vmul.f32 %v310, %v310
      %v407 = vmul.f32 %v311, %v311
      %v408 = vmul.f32 %v312, %v312
      %v409 = vmul.f32 %v313, %v313
      %v410 = vmul.f32 %v314, %v314
      %v411 = vmul.f32 %v315, %v315
      %v412 = vmul.f32 %v316, %v316
      %v413 = vmul.f32 %v317, %v317
      %v414 = vmul.f32 %v318, %v318
      %v415 = vmul.f32 %v319, %v319
      %v416 = vmul.f32 %v320, %v320
      %v417 = vmul.f32 %v321, %v321
      %v418 = vmul.f32 %v322, %v322
      %v419 = vmul.f32 %v323, %v323
      %v420 = vmul.f32 %v324, %v324
      %v421 = vmul.f32 %v325, %v325
      %v422 = vsub.f32 %v390, %v406
      %v423 = vsub.f32 %v391, %v407
      %v424 = vsub.f32 %v392, %v408
      %v425 = vsub.f32 %v393, %v409
      %v426 = vsub.f32 %v394, %v410
      %v427 = vsub.f32 %v395, %v411
      %v428 = vsub.f32 %v396, %v412
      %v429 = vsub.f32 %v397, %v413
      %v430 = vsub.f32 %v398, %v414
      %v431 = vsub.f32 %v399, %v415
      %v432 = vsub.f32 %v400, %v416
      %v433 = vsub.f32 %v401, %v417
      %v434 = vsub.f32 %v402, %v418
      %v435 = vsub.f32 %v403, %v419
      %v436 = vsub.f32 %v404, %v420
      %v437 = vsub.f32 %v405, %v421
      %v438 = vmax.f32 %v422, 0.0
      %v439 = vmax.f32 %v423, 0.0
      %v440 = vmax.f32 %v424, 0.0
      %v441 = vmax.f32 %v425, 0.0
      %v442 = vmax.f32 %v426, 0.0
      %v443 = vmax.f32 %v427, 0.0
      %v444 = vmax.f32 %v428, 0.0
      %v445 = vmax.f32 %v429, 0.0
      %v446 = vmax.f32 %v430, 0.0
      %v447 = vmax.f32 %v431, 0.0
      %v448 = vmax.f32 %v432, 0.0
      %v449 = vmax.f32 %v433, 0.0
      %v450 = vmax.f32 %v434, 0.0
      %v451 = vmax.f32 %v435, 0.0
      %v452 = vmax.f32 %v436, 0.0
      %v453 = vmax.f32 %v437, 0.0
      %v454 = vsub.f32 %v244, %v310
      %v455 = vsub.f32 %v245, %v311
      %v456 = vsub.f32 %v246, %v312
      %v457 = vsub.f32 %v247, %v313
      %v458 = vsub.f32 %v248, %v314
      %v459 = vsub.f32 %v249, %v315
      %v460 = vsub.f32 %v250, %v316
      %v461 = vsub.f32 %v251, %v317
      %v462 = vsub.f32 %v252, %v318
      %v463 = vsub.f32 %v253, %v319
      %v464 = vsub.f32 %v254, %v320
      %v465 = vsub.f32 %v255, %v321
      %v466 = vsub.f32 %v256, %v322
      %v467 = vsub.f32 %v257, %v323
      %v468 = vsub.f32 %v258, %v324
      %v469 = vsub.f32 %v259, %v325
      %v470 = vadd.f32 %v438, 1e-05
      %v471 = vadd.f32 %v439, 1e-05
      %v472 = vadd.f32 %v440, 1e-05
      %v473 = vadd.f32 %v441, 1e-05
      %v474 = vadd.f32 %v442, 1e-05
      %v475 = vadd.f32 %v443, 1e-05
      %v476 = vadd.f32 %v444, 1e-05
      %v477 = vadd.f32 %v445, 1e-05
      %v478 = vadd.f32 %v446, 1e-05
      %v479 = vadd.f32 %v447, 1e-05
      %v480 = vadd.f32 %v448, 1e-05
      %v481 = vadd.f32 %v449, 1e-05
      %v482 = vadd.f32 %v450, 1e-05
      %v483 = vadd.f32 %v451, 1e-05
      %v484 = vadd.f32 %v452, 1e-05
      %v485 = vadd.f32 %v453, 1e-05
      %v486 = vrsqrt.pop %v470
      %v487 = vrsqrt.pop %v471
      %v488 = vrsqrt.pop %v472
      %v489 = vrsqrt.pop %v473
      %v490 = vrsqrt.pop %v474
      %v491 = vrsqrt.pop %v475
      %v492 = vrsqrt.pop %v476
      %v493 = vrsqrt.pop %v477
      %v494 = vrsqrt.pop %v478
      %v495 = vrsqrt.pop %v479
      %v496 = vrsqrt.pop %v480
      %v497 = vrsqrt.pop %v481
      %v498 = vrsqrt.pop %v482
      %v499 = vrsqrt.pop %v483
      %v500 = vrsqrt.pop %v484
      %v501 = vrsqrt.pop %v485
      %v502 = vmul.f32 %v454, %v486
      %v503 = vmul.f32 %v455, %v487
      %v504 = vmul.f32 %v456, %v488
      %v505 = vmul.f32 %v457, %v489
      %v506 = vmul.f32 %v458, %v490
      %v507 = vmul.f32 %v459, %v491
      %v508 = vmul.f32 %v460, %v492
      %v509 = vmul.f32 %v461, %v493
      %v510 = vmul.f32 %v462, %v494
      %v511 = vmul.f32 %v463, %v495
      %v512 = vmul.f32 %v464, %v496
      %v513 = vmul.f32 %v465, %v497
      %v514 = vmul.f32 %v466, %v498
      %v515 = vmul.f32 %v467, %v499
      %v516 = vmul.f32 %v468, %v500
      %v517 = vmul.f32 %v469, %v501
      %v519 = vlaneseq
      %v520 = vshrl.u32 %v519, 7
      %v521 = vsub.s32 0, %v520
      %v522 = vrot.slane %v242, %v521
      %v524 = vmul.f32 %v502, %v522
      %v525 = vmul.f32 %v503, %v522
      %v526 = vmul.f32 %v504, %v522
      %v527 = vmul.f32 %v505, %v522
      %v528 = vmul.f32 %v506, %v522
      %v529 = vmul.f32 %v507, %v522
      %v530 = vmul.f32 %v508, %v522
      %v531 = vmul.f32 %v509, %v522
      %v532 = vmul.f32 %v510, %v522
      %v533 = vmul.f32 %v511, %v522
      %v534 = vmul.f32 %v512, %v522
      %v535 = vmul.f32 %v513, %v522
      %v536 = vmul.f32 %v514, %v522
      %v537 = vmul.f32 %v515, %v522
      %v538 = vmul.f32 %v516, %v522
      %v539 = vmul.f32 %v517, %v522
      %v541 = vlaneseq
      %v542 = vshrl.u32 %v541, 7
      %v543 = vsub.s32 0, %v542
      %v544 = vrot.slane %v243, %v543
      %v546 = vadd.f32 %v524, %v544
      %v547 = vadd.f32 %v525, %v544
      %v548 = vadd.f32 %v526, %v544
      %v549 = vadd.f32 %v527, %v544
      %v550 = vadd.f32 %v528, %v544
      %v551 = vadd.f32 %v529, %v544
      %v552 = vadd.f32 %v530, %v544
      %v553 = vadd.f32 %v531, %v544
      %v554 = vadd.f32 %v532, %v544
      %v555 = vadd.f32 %v533, %v544
      %v556 = vadd.f32 %v534, %v544
      %v557 = vadd.f32 %v535, %v544
      %v558 = vadd.f32 %v536, %v544
      %v559 = vadd.f32 %v537, %v544
      %v560 = vadd.f32 %v538, %v544
      %v561 = vadd.f32 %v539, %v544
      %v562 = vpack.c.bf16 %v547, %v546
      %v563 = vpack.c.bf16 %v549, %v548
      %v564 = vpack.c.bf16 %v551, %v550
      %v565 = vpack.c.bf16 %v553, %v552
      %v566 = vpack.c.bf16 %v555, %v554
      %v567 = vpack.c.bf16 %v557, %v556
      %v568 = vpack.c.bf16 %v559, %v558
      %v569 = vpack.c.bf16 %v561, %v560
      %v570 = vld [vmem:[%s3] sm:$0xf]
      %v571 = vld [vmem:[%s3 + $0x4] sm:$0xf]
      %v572 = vld [vmem:[%s3 + $0x8] sm:$0xf]
      %v573 = vld [vmem:[%s3 + $0xc] sm:$0xf]
      %v574 = vld [vmem:[%s4] sm:$0x1]
      %v576 = vlaneseq
      %v577 = vshrl.u32 %v576, 7
      %v578 = vsub.s32 0, %v577
      %v579 = vrot.slane %v574, %v578
      %v585 = vunpack.c.l.b16 %v570
      %v586 = vunpack.c.l.b16 %v571
      %v587 = vunpack.c.l.b16 %v572
      %v588 = vunpack.c.l.b16 %v573
      %v589 = vpack.c.b16 %v586, %v585
      %v590 = vpack.c.b16 %v588, %v587
      %v594 = vsel %vm260, %v562, 0
      %v597 = vsel %vm260, %v563, 0
      %v600 = vsel %vm260, %v564, 0
      %v603 = vsel %vm260, %v565, 0
      %v606 = vsel %vm260, %v566, 0
      %v609 = vsel %vm260, %v567, 0
      %v612 = vsel %vm260, %v568, 0
      %v615 = vsel %vm260, %v569, 0
      %617 = vmatprep.subr.bf16.mxu0 0
      %618 = vmatpush1.bf16.msra.mxu0 %v589
      %619 = vmatprep.subr.bf16.mxu0 0
      %620 = vmatpush1.bf16.msra.mxu0 %v590
      %621 = vmatprep.subr.bf16.mxu0 0
      %622 = vmatpush1.bf16.msra.mxu0 0
      %623 = vmatprep.subr.bf16.mxu0 0
      %624 = vmatpush1.bf16.msra.mxu0 0
      %625 = vmatprep.subr.bf16.mxu0 0
      %626 = vmatpush1.bf16.msra.mxu0 0
      %627 = vmatprep.subr.bf16.mxu0 0
      %628 = vmatpush1.bf16.msra.mxu0 0
      %629 = vmatprep.subr.bf16.mxu0 0
      %630 = vmatpush1.bf16.msra.mxu0 0
      %631 = vmatprep.subr.bf16.mxu0 0
      %632 = vmatpush1.bf16.msra.mxu0 0
      %633 = vmatprep.subr.bf16.mxu0 0
      %634 = vmatpush1.bf16.msra.mxu0 0
      %635 = vmatprep.subr.bf16.mxu0 0
      %636 = vmatpush1.bf16.msra.mxu0 0
      %637 = vmatprep.subr.bf16.mxu0 0
      %638 = vmatpush1.bf16.msra.mxu0 0
      %639 = vmatprep.subr.bf16.mxu0 0
      %640 = vmatpush1.bf16.msra.mxu0 0
      %641 = vmatprep.subr.bf16.mxu0 0
      %642 = vmatpush1.bf16.msra.mxu0 0
      %643 = vmatprep.subr.bf16.mxu0 0
      %644 = vmatpush1.bf16.msra.mxu0 0
      %645 = vmatprep.subr.bf16.mxu0 0
      %646 = vmatpush1.bf16.msra.mxu0 0
      %647 = vmatprep.subr.bf16.mxu0 0
      %648 = vmatpush1.bf16.msra.mxu0 0
      %649 = vmatprep.mubr.bf16.mxu0 0
      %650 = vmatmul.mubr.bf16.gmra.mrb[0].mxu0 %v594
      %v651 = vpop.f32.mrb[0].mxu0
      %v652 = vadd.f32 %v579, %v651
      %v653 = vpop.f32.mrb[0].mxu0
      %v654 = vpop.f32.mrb[0].mxu0
      %v655 = vadd.f32 %v579, %v654
      %v656 = vpop.f32.mrb[0].mxu0
      %657 = vmatprep.mubr.bf16.mxu0 0
      %658 = vmatmul.mubr.bf16.gmra.mrb[0].mxu0 %v597
      %v659 = vpop.f32.mrb[0].mxu0
      %v660 = vadd.f32 %v579, %v659
      %v661 = vpop.f32.mrb[0].mxu0
      %v662 = vpop.f32.mrb[0].mxu0
      %v663 = vadd.f32 %v579, %v662
      %v664 = vpop.f32.mrb[0].mxu0
      %665 = vmatprep.mubr.bf16.mxu0 0
      %666 = vmatmul.mubr.bf16.gmra.mrb[0].mxu0 %v600
      %v667 = vpop.f32.mrb[0].mxu0
      %v668 = vadd.f32 %v579, %v667
      %v669 = vpop.f32.mrb[0].mxu0
      %v670 = vpop.f32.mrb[0].mxu0
      %v671 = vadd.f32 %v579, %v670
      %v672 = vpop.f32.mrb[0].mxu0
      %673 = vmatprep.mubr.bf16.mxu0 0
      %674 = vmatmul.mubr.bf16.gmra.mrb[0].mxu0 %v603
      %v675 = vpop.f32.mrb[0].mxu0
      %v676 = vadd.f32 %v579, %v675
      %v677 = vpop.f32.mrb[0].mxu0
      %v678 = vpop.f32.mrb[0].mxu0
      %v679 = vadd.f32 %v579, %v678
      %v680 = vpop.f32.mrb[0].mxu0
      %681 = vmatprep.mubr.bf16.mxu0 0
      %682 = vmatmul.mubr.bf16.gmra.mrb[0].mxu0 %v606
      %v683 = vpop.f32.mrb[0].mxu0
      %v684 = vadd.f32 %v579, %v683
      %v685 = vpop.f32.mrb[0].mxu0
      %v686 = vpop.f32.mrb[0].mxu0
      %v687 = vadd.f32 %v579, %v686
      %v688 = vpop.f32.mrb[0].mxu0
      %689 = vmatprep.mubr.bf16.mxu0 0
      %690 = vmatmul.mubr.bf16.gmra.mrb[0].mxu0 %v609
      %v691 = vpop.f32.mrb[0].mxu0
      %v692 = vadd.f32 %v579, %v691
      %v693 = vpop.f32.mrb[0].mxu0
      %v694 = vpop.f32.mrb[0].mxu0
      %v695 = vadd.f32 %v579, %v694
      %v696 = vpop.f32.mrb[0].mxu0
      %697 = vmatprep.mubr.bf16.mxu0 0
      %698 = vmatmul.mubr.bf16.gmra.mrb[0].mxu0 %v612
      %v699 = vpop.f32.mrb[0].mxu0
      %v700 = vadd.f32 %v579, %v699
      %v701 = vpop.f32.mrb[0].mxu0
      %v702 = vpop.f32.mrb[0].mxu0
      %v703 = vadd.f32 %v579, %v702
      %v704 = vpop.f32.mrb[0].mxu0
      %705 = vmatprep.mubr.bf16.mxu0 0
      %706 = vmatmul.mubr.bf16.gmra.mrb[0].mxu0 %v615
      %v707 = vpop.f32.mrb[0].mxu0
      %v708 = vadd.f32 %v579, %v707
      %v709 = vpop.f32.mrb[0].mxu0
      %v710 = vpop.f32.mrb[0].mxu0
      %v711 = vadd.f32 %v579, %v710
      %v712 = vpop.f32.mrb[0].mxu0
      %713 = vdwg.mxu0
      %v714 = vpack.c.bf16 %v655, %v652
      %v715 = vpack.c.bf16 %v663, %v660
      %v716 = vpack.c.bf16 %v671, %v668
      %v717 = vpack.c.bf16 %v679, %v676
      %v718 = vpack.c.bf16 %v687, %v684
      %v719 = vpack.c.bf16 %v695, %v692
      %v720 = vpack.c.bf16 %v703, %v700
      %v721 = vpack.c.bf16 %v711, %v708
      %v730 = vunpack.c.l.b16 %v714
      %v731 = vunpack.c.h.b16 %v714
      %v732 = vunpack.c.l.b16 %v715
      %v733 = vunpack.c.h.b16 %v715
      %v734 = vunpack.c.l.b16 %v716
      %v735 = vunpack.c.h.b16 %v716
      %v736 = vunpack.c.l.b16 %v717
      %v737 = vunpack.c.h.b16 %v717
      %v738 = vunpack.c.l.b16 %v718
      %v739 = vunpack.c.h.b16 %v718
      %v740 = vunpack.c.l.b16 %v719
      %v741 = vunpack.c.h.b16 %v719
      %v742 = vunpack.c.l.b16 %v720
      %v743 = vunpack.c.h.b16 %v720
      %v744 = vunpack.c.l.b16 %v721
      %v745 = vunpack.c.h.b16 %v721
      %v746 = vpack.c.b16 %v730, %v730
      %v747 = vpack.c.b16 %v731, %v731
      %v748 = vpack.c.b16 %v732, %v732
      %v749 = vpack.c.b16 %v733, %v733
      %v750 = vpack.c.b16 %v734, %v734
      %v751 = vpack.c.b16 %v735, %v735
      %v752 = vpack.c.b16 %v736, %v736
      %v753 = vpack.c.b16 %v737, %v737
      %v754 = vpack.c.b16 %v738, %v738
      %v755 = vpack.c.b16 %v739, %v739
      %v756 = vpack.c.b16 %v740, %v740
      %v757 = vpack.c.b16 %v741, %v741
      %v758 = vpack.c.b16 %v742, %v742
      %v759 = vpack.c.b16 %v743, %v743
      %v760 = vpack.c.b16 %v744, %v744
      %v761 = vpack.c.b16 %v745, %v745
      %vm778 = vcmask 257024
      %779 = vst.msk [vmem:[%s224] sm:$0xf] %vm778, %v746
      %780 = vst.msk [vmem:[%s224 + $0x4] sm:$0xf] %vm778, %v747
      %781 = vst.msk [vmem:[%s224 + $0x8] sm:$0xf] %vm778, %v748
      %782 = vst.msk [vmem:[%s224 + $0xc] sm:$0xf] %vm778, %v749
      %783 = vst.msk [vmem:[%s224 + $0x10] sm:$0xf] %vm778, %v750
      %784 = vst.msk [vmem:[%s224 + $0x14] sm:$0xf] %vm778, %v751
      %785 = vst.msk [vmem:[%s224 + $0x18] sm:$0xf] %vm778, %v752
      %786 = vst.msk [vmem:[%s224 + $0x1c] sm:$0xf] %vm778, %v753
      %787 = vst.msk [vmem:[%s224 + $0x20] sm:$0xf] %vm778, %v754
      %788 = vst.msk [vmem:[%s224 + $0x24] sm:$0xf] %vm778, %v755
      %789 = vst.msk [vmem:[%s224 + $0x28] sm:$0xf] %vm778, %v756
      %790 = vst.msk [vmem:[%s224 + $0x2c] sm:$0xf] %vm778, %v757
      %791 = vst.msk [vmem:[%s224 + $0x30] sm:$0xf] %vm778, %v758
      %792 = vst.msk [vmem:[%s224 + $0x34] sm:$0xf] %vm778, %v759
      %793 = vst.msk [vmem:[%s224 + $0x38] sm:$0xf] %vm778, %v760
      %794 = vst.msk [vmem:[%s224 + $0x3c] sm:$0xf] %vm778, %v761
      %p795 = scmp.lt.s32.totalorder %s16, 1
      %s796 = scalar_select %p795, %s16, 1
      %s797 = smul.addr %s796, 16
      %s798 = smul.addr %s797, 4
      %s799 = scalar_lea.vmem %s5, %s798
      // Predicated region
      $region41: #{tpu_custom_call.1} parent=39 // pred_check
        %p800 = pneg %p144
      $region42: #{tpu_custom_call.1} parent=39 // pred_check_branch
        %802 = sbr.rel (%p800) target = $region44
      $region43: #{tpu_custom_call.1} parent=39 // pred_region
        _
      $region44: #{tpu_custom_call.1} parent=39 // pred_fallthru
        _
    $region40: #{tpu_custom_call.1} parent=5 // pred_fallthru
      _
    %p803 = scmp.le.s32.totalorder 2, %s11
    // Predicated region
    $region45: #{tpu_custom_call.1} parent=5 // pred_check
      %p804 = pneg %p803
    $region46: #{tpu_custom_call.1} parent=5 // pred_check_branch
      %806 = sbr.rel (%p804) target = $region48
    $region47: #{tpu_custom_call.1} parent=5 // pred_region
      %s807 = ssub.s32 %s11, 2
      // Predicated region
      $region49: #{tpu_custom_call.1} parent=47 // pred_check
        %p808 = pneg %p150
      $region50: #{tpu_custom_call.1} parent=47 // pred_check_branch
        %810 = sbr.rel (%p808) target = $region52
      $region51: #{tpu_custom_call.1} parent=47 // pred_region
        %p811 = scmp.lt.s32.totalorder %s17, 1
        %s812 = scalar_select %p811, %s17, 1
        %s813 = smul.addr %s812, 16
        %s814 = smul.addr %s813, 4
        %s815 = scalar_lea.vmem %s5, %s814
      $region52: #{tpu_custom_call.1} parent=47 // pred_fallthru
        _
    $region48: #{tpu_custom_call.1} parent=5 // pred_fallthru
      _
  $region6: #{tpu_custom_call.1} parent=0 // loop_footer
    %s15 = sadd.s32 1, %s11
  $region7: #{tpu_custom_call.1} parent=0 // loop_footer_branch
    %10 = sbr.rel target = $region3
  $region8: #{tpu_custom_call.1} parent=0 // loop_exit
    _

</llo_original>
